<compile_context>
chip_gen: v7x
topology: tpu7x:2x2x1
jax: 0.10.0
libtpu: 0.0.40
codegen_flags: <defaults>
</compile_context>

<pallas_src>
import jax
import jax.numpy as jnp
from jax.experimental import pallas as pl
from jax.experimental.pallas import tpu as pltpu


def _input_normalize_kernel(mean_ref, inv_std_ref, x_ref, o_ref):
    # mean_ref / inv_std_ref: (C,) float32 in SMEM (scalar-indexed per channel).
    # x_ref / o_ref: (bn, 1, D2, D3) VMEM tile for the current (batch-block, channel).
    c = pl.program_id(1)
    m = mean_ref[c]            # scalar, f32
    inv_s = inv_std_ref[c]     # scalar, f32 (precomputed reciprocal -> VPU mul, no divide)
    x = jnp.clip(x_ref[...].astype(jnp.float32), 0.0, 1.0)   # torch.clamp(x, 0, 1)
    o_ref[...] = ((x - m) * inv_s).astype(o_ref.dtype)        # (x - mean) / std


def input_normalize(x, new_mean, new_std, *, target_tile_bytes=2 * 1024 * 1024):
    """x: (N, C, H, W); new_mean, new_std: (C,). Returns (N, C, H, W) with x.dtype."""
    N, C, H, W = x.shape
    mean = new_mean.astype(jnp.float32)
    inv_std = (1.0 / new_std).astype(jnp.float32)   # NOTE: std==0 gives inf (matches torch div-by-0)

    itemsize = jnp.dtype(x.dtype).itemsize
    hw = H * W

    # Lane-dense layout when possible: (N, C, H*W//128, 128). Free contiguous reshape.
    if hw % 128 == 0:
        x_in = x.reshape(N, C, hw // 128, 128)
    else:
        # Fallback for odd spatial sizes: keep (H, W) as the tile (correct, just lane-sparse).
        x_in = x
    _, _, D2, D3 = x_in.shape

    # Block over batch too: pick the largest divisor of N whose per-channel tile fits the
    # target (~2 MB => 2 bufs x 2 arrays x 2 MB = 8 MB pipelined, safe on v5e/v6e/v7x defaults).
    plane_bytes = D2 * D3 * itemsize
    bn = 1
    for d in range(1, N + 1):
        if N % d == 0 and d * plane_bytes <= target_tile_bytes:
            bn = d

    grid = (N // bn, C)
    block = (bn, 1, D2, D3)

    out = pl.pallas_call(
        _input_normalize_kernel,
        out_shape=jax.ShapeDtypeStruct(x_in.shape, x.dtype),
        grid=grid,
        in_specs=[
            pl.BlockSpec(memory_space=pltpu.SMEM),                  # mean     (C,)
            pl.BlockSpec(memory_space=pltpu.SMEM),                  # inv_std  (C,)
            pl.BlockSpec(block, lambda n, c: (n, c, 0, 0)),         # x tile
        ],
        out_specs=pl.BlockSpec(block, lambda n, c: (n, c, 0, 0)),
        compiler_params=pltpu.CompilerParams(
            dimension_semantics=("parallel", "parallel")            # both axes shardable across TCs
        ),
    )(mean, inv_std, x_in)

    return out.reshape(N, C, H, W)


if __name__ == "__main__":
    key = jax.random.PRNGKey(0)
    N, C, H, W = 2, 4, 16, 16

    # Deterministic "buffer" initialization (what __init__ would register).
    new_mean = jnp.array([0.485, 0.456, 0.406, 0.5], dtype=jnp.float32)   # (C,)
    new_std = jnp.array([0.229, 0.224, 0.225, 0.25], dtype=jnp.float32)   # (C,)

    # Input slightly outside [0, 1] so the clamp matters.
    x = jax.random.uniform(key, (N, C, H, W), dtype=jnp.float32,
                           minval=-0.25, maxval=1.25)

    out = input_normalize(x, new_mean, new_std)
    out = jax.block_until_ready(out)

    # Pure-JAX reference (mirrors the torch forward exactly, with a true divide).
    ref = (jnp.clip(x, 0.0, 1.0) - new_mean[None, :, None, None]) / new_std[None, :, None, None]
    assert out.shape == x.shape and out.dtype == x.dtype
    assert jnp.allclose(out, ref, atol=1e-5, rtol=1e-5)

    print("KERNEL_OK")
</pallas_src>

<mosaic_0001>
module attributes {stable_mosaic.version = 11 : i64} {
  func.func @_input_normalize_kernel(%arg0: i32, %arg1: i32, %arg2: memref<4xf32, #tpu.memory_space<smem>>, %arg3: memref<4xf32, #tpu.memory_space<smem>>, %arg4: memref<2x1x2x128xf32, #tpu.memory_space<vmem>>, %arg5: memref<2x1x2x128xf32, #tpu.memory_space<vmem>>) attributes {dimension_semantics = [#tpu.dimension_semantics<parallel>, #tpu.dimension_semantics<parallel>], iteration_bounds = array<i64: 1, 4>, scalar_prefetch = 0 : i64, scratch_operands = 0 : i64, tpu.core_type = #tpu.core_type<tc>, window_params = [{transform_indices = @transform_0, window_bounds = array<i64: 4>}, {transform_indices = @transform_1, window_bounds = array<i64: 4>}, {transform_indices = @transform_2, window_bounds = array<i64: 2, 1, 2, 128>}, {transform_indices = @transform_3, window_bounds = array<i64: 2, 1, 2, 128>}]} {
    %0 = arith.index_cast %arg1 : i32 to index
    %1 = memref.load %arg2[%0] : memref<4xf32, #tpu.memory_space<smem>>
    %2 = arith.index_cast %arg1 : i32 to index
    %3 = memref.load %arg3[%2] : memref<4xf32, #tpu.memory_space<smem>>
    %c0 = arith.constant 0 : index
    %c0_0 = arith.constant 0 : index
    %c0_1 = arith.constant 0 : index
    %c0_2 = arith.constant 0 : index
    %4 = vector.load %arg4[%c0, %c0_0, %c0_1, %c0_2] : memref<2x1x2x128xf32, #tpu.memory_space<vmem>>, vector<2x1x2x128xf32>
    %cst = arith.constant 0.000000e+00 : f32
    %cst_3 = arith.constant 1.000000e+00 : f32
    %5 = vector.broadcast %cst : f32 to vector<2x1x2x128xf32>
    %6 = arith.maximumf %5, %4 : vector<2x1x2x128xf32>
    %7 = vector.broadcast %cst_3 : f32 to vector<2x1x2x128xf32>
    %8 = arith.minimumf %7, %6 : vector<2x1x2x128xf32>
    %9 = vector.broadcast %1 : f32 to vector<2x1x2x128xf32>
    %10 = arith.subf %8, %9 : vector<2x1x2x128xf32>
    %11 = vector.broadcast %3 : f32 to vector<2x1x2x128xf32>
    %12 = arith.mulf %10, %11 : vector<2x1x2x128xf32>
    %c0_4 = arith.constant 0 : index
    %c0_5 = arith.constant 0 : index
    %c0_6 = arith.constant 0 : index
    %c0_7 = arith.constant 0 : index
    %13 = vector.load %arg5[%c0_4, %c0_5, %c0_6, %c0_7] : memref<2x1x2x128xf32, #tpu.memory_space<vmem>>, vector<2x1x2x128xf32>
    tpu.vector_store %arg5[%c0_4, %c0_5, %c0_6, %c0_7], %12 {strides = array<i32>} : memref<2x1x2x128xf32, #tpu.memory_space<vmem>>, vector<2x1x2x128xf32>,
    return
  }
  func.func @transform_0(%arg0: i32, %arg1: i32) -> i32 {
    %c0_i32 = arith.constant 0 : i32
    %c0_i32_0 = arith.constant 0 : i32
    return %c0_i32 : i32
  }
  func.func @transform_1(%arg0: i32, %arg1: i32) -> i32 {
    %c0_i32 = arith.constant 0 : i32
    %c0_i32_0 = arith.constant 0 : i32
    return %c0_i32 : i32
  }
  func.func @transform_2(%arg0: i32, %arg1: i32) -> (i32, i32, i32, i32) {
    %c0_i32 = arith.constant 0 : i32
    %c0_i32_0 = arith.constant 0 : i32
    %c0_i32_1 = arith.constant 0 : i32
    return %arg0, %arg1, %c0_i32, %c0_i32_0 : i32, i32, i32, i32
  }
  func.func @transform_3(%arg0: i32, %arg1: i32) -> (i32, i32, i32, i32) {
    %c0_i32 = arith.constant 0 : i32
    %c0_i32_0 = arith.constant 0 : i32
    %c0_i32_1 = arith.constant 0 : i32
    return %arg0, %arg1, %c0_i32, %c0_i32_0 : i32, i32, i32, i32
  }
}

</mosaic_0001>

<llo_original>
// kernel: tpu_custom_call.1
$region0: #{tpu_custom_call.1}
  #allocation0 [shape = 'u32[]', space=smem, size = 0x4, offset = 0x4, fixed_abs, tag = 'smem constant byte address 0x4 - core index']
  #allocation1 [shape = 'u32[144,128]{1,0:T(1,128)}', space=vmem, size = 0x12000, scoped, tag = 'internal scratch']
  %s0 = inlined_call_operand.hbm [shape: f32[4], index: 0, kind: input, shape index: {}]
  %s1 = inlined_call_operand.vmem [shape: f32[4], index: 1, kind: input, shape index: {}]
  %s2 = inlined_call_operand.hbm [shape: f32[2,4,2,128], index: 2, kind: input, shape index: {}]
  %s3 = inlined_call_operand.hbm [shape: f32[2,4,2,128], index: 3, kind: output, shape index: {}]
  %s4 = sld [smem:[#allocation0]]
  $region57: #{tpu_custom_call.1} parent=0
    _
  %s6 = ssub.s32 1, %s4
  %s7 = scalar_select 0, %s6, %s4
  $region1: #{tpu_custom_call.1} parent=0
    #allocation2 [shape = 'u8[512]{0}', space=smem, size = 0x200, scoped, tag = 'input window, operand 0, single buffered']
    #allocation3 [shape = 's32[2]{0}', space=sflag, size = 0x8, scoped, tag = 'scoped memory for tpu_custom_call.1']
    #allocation4 [shape = 's32[2]{0}', space=sflag, size = 0x8, scoped, tag = 'scoped memory for tpu_custom_call.1']
    #allocation5 [shape = 's32[2]{0}', space=sflag, size = 0x8, scoped, tag = 'scoped memory for tpu_custom_call.1']
    #allocation6 [shape = 's32[2]{0}', space=sflag, size = 0x8, scoped, tag = 'scoped memory for tpu_custom_call.1']
    #allocation7 [shape = 'u8[512]{0}', space=smem, size = 0x200, scoped, tag = 'input window, operand 1, single buffered']
    #allocation8 [shape = 'u8[4096]{0}', space=vmem, size = 0x1000, scoped, tag = 'input window, operand 2']
    #allocation9 [shape = 'u8[4096]{0}', space=vmem, size = 0x1000, scoped, tag = 'output window, operand 0']
    %8 = vsyncpa [#allocation5], 0
    %9 = vsyncpa [#allocation6], 0
    %10 = vsyncpa [#allocation3], 0
    %s11 = scalar_lea.sflag [#allocation3], 1
    %12 = vsyncpa %s11, 0
    %13 = vsyncpa [#allocation4], 0
    %s14 = scalar_lea.sflag [#allocation4], 1
    %15 = vsyncpa %s14, 0
    loop: start=0, step=1, limit=6
    $region2: #{tpu_custom_call.1} parent=1 // loop_pre_header
      _
    $region3: #{tpu_custom_call.1} parent=1 // loop_header
      %s17 = sphi 0, %s21
      %p18 = scmp.ge.s32.totalorder %s17, 6
      %s24 = sphi 0, %s36
      %s25 = sphi 0, %s32
      %s26 = sphi 0, %s24
      %s27 = sphi 0, %s25
      %s28 = sphi 0, %s26
      %s29 = sphi 0, %s27
      %s37 = sphi 0, %s37
      %s39 = sphi 0, %s37
      %s40 = sphi 0, %s39
      %s54 = sphi 0, %s40
      %s58 = sphi 0, %s58
      %s60 = sphi 0, %s58
      %s61 = sphi 0, %s60
      %s75 = sphi 0, %s61
      %s83 = sphi 0, %s85
      %s86 = sphi 0, %s83
      %s87 = sphi 0, %s86
      %s103 = sphi 0, %s87
      %s111 = sphi 0, %s113
      %s114 = sphi 0, %s111
      %s115 = sphi 0, %s114
      %s131 = sphi 0, %s115
    $region4: #{tpu_custom_call.1} parent=1 // loop_header_branch
      %20 = sbr.rel (%p18) target = $region8
    $region5: #{tpu_custom_call.1} parent=1 // loop_body
      %s22 = ssub.s32 %s17, 1
      %s23 = ssub.s32 %s17, 2
      %s30 = sadd.s32 1, %s25
      %p31 = scmp.ge.s32.totalorder %s30, 4
      %s32 = scalar_select %p31, 0, %s30
      %s33 = sadd.s32 1, %s24
      %s34 = scalar_select %p31, %s33, %s24
      %p35 = scmp.ge.s32.totalorder %s34, 1
      %s36 = scalar_select %p35, 0, %s34
      %s38 = sadd.s32 %s37, 1
      %p41 = scmp.eq.s32.totalorder %s17, 3
      %p42 = scmp.ne.s32.totalorder %s37, %s39
      %p43 = scmp.eq.s32.totalorder %s17, 0
      %p44 = por %p42, %p43
      %p45 = scmp.ne.s32.totalorder %s37, %s39
      %p46 = scmp.eq.s32.totalorder %s22, 3
      %p47 = por %p45, %p46
      %p48 = scmp.ne.s32.totalorder %s39, %s40
      %p49 = scmp.eq.s32.totalorder %s22, 0
      %p50 = por %p48, %p49
      %p51 = scmp.ne.s32.totalorder %s39, %s40
      %p52 = scmp.eq.s32.totalorder %s23, 3
      %p53 = por %p51, %p52
      %p55 = scmp.ne.s32.totalorder %s40, %s54
      %p56 = scmp.eq.s32.totalorder %s23, 0
      %p57 = por %p55, %p56
      %s59 = sadd.s32 %s58, 1
      %p62 = scmp.eq.s32.totalorder %s17, 3
      %p63 = scmp.ne.s32.totalorder %s58, %s60
      %p64 = scmp.eq.s32.totalorder %s17, 0
      %p65 = por %p63, %p64
      %p66 = scmp.ne.s32.totalorder %s58, %s60
      %p67 = scmp.eq.s32.totalorder %s22, 3
      %p68 = por %p66, %p67
      %p69 = scmp.ne.s32.totalorder %s60, %s61
      %p70 = scmp.eq.s32.totalorder %s22, 0
      %p71 = por %p69, %p70
      %p72 = scmp.ne.s32.totalorder %s60, %s61
      %p73 = scmp.eq.s32.totalorder %s23, 3
      %p74 = por %p72, %p73
      %p76 = scmp.ne.s32.totalorder %s61, %s75
      %p77 = scmp.eq.s32.totalorder %s23, 0
      %p78 = por %p76, %p77
      %s79 = ssub.s32 %s24, %s36
      %s80 = ssub.s32 %s25, %s32
      %s81 = sor.u32 %s79, %s80
      %p82 = scmp.eq.s32.totalorder %s81, 0
      %s84 = sadd.s32 %s83, 1
      %s85 = scalar_select %p82, %s83, %s84
      %p88 = pneg %p82
      %p89 = scmp.eq.s32.totalorder %s17, 3
      %p90 = por %p88, %p89
      %p91 = scmp.ne.s32.totalorder %s83, %s86
      %p92 = scmp.eq.s32.totalorder %s17, 0
      %p93 = por %p91, %p92
      %p94 = scmp.ne.s32.totalorder %s83, %s86
      %p95 = scmp.eq.s32.totalorder %s22, 3
      %p96 = por %p94, %p95
      %p97 = scmp.ne.s32.totalorder %s86, %s87
      %p98 = scmp.eq.s32.totalorder %s22, 0
      %p99 = por %p97, %p98
      %p100 = scmp.ne.s32.totalorder %s86, %s87
      %p101 = scmp.eq.s32.totalorder %s23, 3
      %p102 = por %p100, %p101
      %p104 = scmp.ne.s32.totalorder %s87, %s103
      %p105 = scmp.eq.s32.totalorder %s23, 0
      %p106 = por %p104, %p105
      %s107 = ssub.s32 %s24, %s36
      %s108 = ssub.s32 %s25, %s32
      %s109 = sor.u32 %s107, %s108
      %p110 = scmp.eq.s32.totalorder %s109, 0
      %s112 = sadd.s32 %s111, 1
      %s113 = scalar_select %p110, %s111, %s112
      %p116 = pneg %p110
      %p117 = scmp.eq.s32.totalorder %s17, 3
      %p118 = por %p116, %p117
      %p119 = scmp.ne.s32.totalorder %s111, %s114
      %p120 = scmp.eq.s32.totalorder %s17, 0
      %p121 = por %p119, %p120
      %p122 = scmp.ne.s32.totalorder %s111, %s114
      %p123 = scmp.eq.s32.totalorder %s22, 3
      %p124 = por %p122, %p123
      %p125 = scmp.ne.s32.totalorder %s114, %s115
      %p126 = scmp.eq.s32.totalorder %s22, 0
      %p127 = por %p125, %p126
      %p128 = scmp.ne.s32.totalorder %s114, %s115
      %p129 = scmp.eq.s32.totalorder %s23, 3
      %p130 = por %p128, %p129
      %p132 = scmp.ne.s32.totalorder %s115, %s131
      %p133 = scmp.eq.s32.totalorder %s23, 0
      %p134 = por %p132, %p133
      %p135 = scmp.le.s32.totalorder 1, %s17
      %p136 = scmp.lt.s32.totalorder %s17, 5
      %p137 = pnand %p135, %p136
      %p138 = pneg %p137
      // Predicated region
      $region9: #{tpu_custom_call.1} parent=5 // pred_check
        _
      $region10: #{tpu_custom_call.1} parent=5 // pred_check_branch
        %140 = sbr.rel (%p137) target = $region12
      $region11: #{tpu_custom_call.1} parent=5 // pred_region
        %s141 = ssub.s32 %s17, 1
        // Predicated region
        $region13: #{tpu_custom_call.1} parent=11 // pred_check
          %p142 = pneg %p50
        $region14: #{tpu_custom_call.1} parent=11 // pred_check_branch
          %144 = sbr.rel (%p142) target = $region16
        $region15: #{tpu_custom_call.1} parent=11 // pred_region
          %s146 = ssub.s32 16, 16
          %147 = vsyncadd [#allocation5], %s146
          %150 = dma.hbm_to_smem %s0, 16, [#allocation2], [#allocation5]
        $region16: #{tpu_custom_call.1} parent=11 // pred_fallthru
          _
        // Predicated region
        $region17: #{tpu_custom_call.1} parent=11 // pred_check
          %p151 = pneg %p71
        $region18: #{tpu_custom_call.1} parent=11 // pred_check_branch
          %153 = sbr.rel (%p151) target = $region20
        $region19: #{tpu_custom_call.1} parent=11 // pred_region
          %s155 = ssub.s32 16, 16
          %156 = vsyncadd [#allocation6], %s155
          %s158 = sshll.u32 %s1, 4
          %s159 = int_to_ptr.vmem [resolvable:$true] %s158
          %161 = dma.vmem_to_smem %s159, 16, [#allocation7], [#allocation6]
        $region20: #{tpu_custom_call.1} parent=11 // pred_fallthru
          _
      $region12: #{tpu_custom_call.1} parent=5 // pred_fallthru
        _
      %p162 = scmp.lt.s32.totalorder %s17, 4
      // Predicated region
      $region21: #{tpu_custom_call.1} parent=5 // pred_check
        %p163 = pneg %p162
      $region22: #{tpu_custom_call.1} parent=5 // pred_check_branch
        %165 = sbr.rel (%p163) target = $region24
      $region23: #{tpu_custom_call.1} parent=5 // pred_region
        // Predicated region
        $region25: #{tpu_custom_call.1} parent=23 // pred_check
          %p166 = pneg %p93
        $region26: #{tpu_custom_call.1} parent=23 // pred_check_branch
          %168 = sbr.rel (%p166) target = $region28
        $region27: #{tpu_custom_call.1} parent=23 // pred_region
          %s169 = sand.u32 %s83, 1
          %s170 = scalar_lea.sflag [#allocation3], %s169
          %s171 = sand.u32 %s83, 1
          %s172 = smul.addr %s171, 4
          %s173 = scalar_lea.vmem [#allocation8], %s172
          %s174 = smul.u32 2, %s24
          %s176 = ssub.s32 64, 64
          %177 = vsyncadd %s170, %s176
          %s178 = smul.addr %s174, 4
          %s179 = sadd.s32 %s25, %s178
          %s180 = smul.addr %s179, 32
          %s181 = scalar_lea.hbm %s2, %s180
          %s182 = sshll.u32 %s173, 4
          %s183 = int_to_ptr.vmem [resolvable:$true] %s182
          %188 = dma.hbm_to_vmem [thread:$0]  %s181, 64, %s183, %s170, 128, 32, 2
        $region28: #{tpu_custom_call.1} parent=23 // pred_fallthru
          _
      $region24: #{tpu_custom_call.1} parent=5 // pred_fallthru
        _
      %p189 = scmp.le.s32.totalorder 1, %s17
      %p190 = scmp.lt.s32.totalorder %s17, 5
      %p191 = pnand %p189, %p190
      %p192 = pneg %p191
      // Predicated region
      $region29: #{tpu_custom_call.1} parent=5 // pred_check
        _
      $region30: #{tpu_custom_call.1} parent=5 // pred_check_branch
        %194 = sbr.rel (%p191) target = $region32
      $region31: #{tpu_custom_call.1} parent=5 // pred_region
        %s195 = ssub.s32 %s17, 1
        // Predicated region
        $region33: #{tpu_custom_call.1} parent=31 // pred_check
          %p196 = pneg %p50
        $region34: #{tpu_custom_call.1} parent=31 // pred_check_branch
          %198 = sbr.rel (%p196) target = $region36
        $region35: #{tpu_custom_call.1} parent=31 // pred_region
          %199 = dma.done [#allocation5], 16
        $region36: #{tpu_custom_call.1} parent=31 // pred_fallthru
          _
        // Predicated region
        $region37: #{tpu_custom_call.1} parent=31 // pred_check
          %p200 = pneg %p71
        $region38: #{tpu_custom_call.1} parent=31 // pred_check_branch
          %202 = sbr.rel (%p200) target = $region40
        $region39: #{tpu_custom_call.1} parent=31 // pred_region
          %203 = dma.done [#allocation6], 16
        $region40: #{tpu_custom_call.1} parent=31 // pred_fallthru
          _
        %s204 = sand.u32 %s86, 1
        %s205 = scalar_lea.sflag [#allocation3], %s204
        %s206 = sand.u32 %s86, 1
        %s207 = smul.addr %s206, 4
        %s208 = scalar_lea.vmem [#allocation8], %s207
        // Predicated region
        $region41: #{tpu_custom_call.1} parent=31 // pred_check
          %p209 = pneg %p99
        $region42: #{tpu_custom_call.1} parent=31 // pred_check_branch
          %211 = sbr.rel (%p209) target = $region44
        $region43: #{tpu_custom_call.1} parent=31 // pred_region
          %212 = dma.done %s205, 64
        $region44: #{tpu_custom_call.1} parent=31 // pred_fallthru
          _
        %213 = sfence
        %p214 = pneg %p50
        %p215 = pneg %p47
        %p216 = pneg %p71
        %p217 = pneg %p68
        %s218 = sand.u32 %s86, 1
        %s219 = scalar_lea.sflag [#allocation3], %s218
        %s220 = sand.u32 %s86, 1
        %s221 = smul.addr %s220, 4
        %s222 = scalar_lea.vmem [#allocation8], %s221
        %p223 = pneg %p99
        %p224 = pneg %p96
        %p225 = pneg %p127
        %p226 = pneg %p124
        %s227 = sand.u32 %s114, 1
        %s228 = scalar_lea.sflag [#allocation4], %s227
        %s229 = sand.u32 %s114, 1
        %s230 = smul.addr %s229, 4
        %s231 = scalar_lea.vmem [#allocation9], %s230
        %s232 = smul.u32 2, %s26
        %s233 = smul.u32 2, %s26
        %s234 = sld [smem:[#allocation2 + %s27]]
        %s235 = sld [smem:[#allocation7 + %s27]]
        %v236 = vld [vmem:[%s208] sm:$0x3]
        %v237 = vld [vmem:[%s208 + $0x2] sm:$0x3]
        %v238 = vmax.f32 %v236, 0.0
        %v239 = vmax.f32 %v237, 0.0
        %v240 = vmin.f32 %v238, 1.0
        %v241 = vmin.f32 %v239, 1.0
        %v242 = vstv %s234
        %v243 = vsub.f32 %v240, %v242
        %v244 = vsub.f32 %v241, %v242
        %v245 = vstv %s235
        %v246 = vmul.f32 %v243, %v245
        %v247 = vmul.f32 %v244, %v245
        %248 = vst [vmem:[%s231] sm:$0x3] %v246
        %249 = vst [vmem:[%s231 + $0x2] sm:$0x3] %v247
        %s250 = sand.u32 %s114, 1
        %s251 = scalar_lea.sflag [#allocation4], %s250
        %s252 = sand.u32 %s114, 1
        %s253 = smul.addr %s252, 4
        %s254 = scalar_lea.vmem [#allocation9], %s253
        // Predicated region
        $region45: #{tpu_custom_call.1} parent=31 // pred_check
          %p255 = pneg %p124
        $region46: #{tpu_custom_call.1} parent=31 // pred_check_branch
          %257 = sbr.rel (%p255) target = $region48
        $region47: #{tpu_custom_call.1} parent=31 // pred_region
          %s258 = smul.u32 2, %s26
          %s260 = ssub.s32 64, 64
          %261 = vsyncadd %s251, %s260
          %s262 = smul.addr %s258, 4
          %s263 = sadd.s32 %s27, %s262
          %s264 = smul.addr %s263, 32
          %s265 = scalar_lea.hbm %s3, %s264
          %s266 = sshll.u32 %s254, 4
          %s267 = int_to_ptr.vmem [resolvable:$true] %s266
          %272 = dma.vmem_to_hbm [thread:$0]  %s267, 64, %s265, %s251, 32, 128, 2
        $region48: #{tpu_custom_call.1} parent=31 // pred_fallthru
          _
      $region32: #{tpu_custom_call.1} parent=5 // pred_fallthru
        _
      %p273 = scmp.le.s32.totalorder 2, %s17
      // Predicated region
      $region49: #{tpu_custom_call.1} parent=5 // pred_check
        %p274 = pneg %p273
      $region50: #{tpu_custom_call.1} parent=5 // pred_check_branch
        %276 = sbr.rel (%p274) target = $region52
      $region51: #{tpu_custom_call.1} parent=5 // pred_region
        %s277 = ssub.s32 %s17, 2
        // Predicated region
        $region53: #{tpu_custom_call.1} parent=51 // pred_check
          %p278 = pneg %p130
        $region54: #{tpu_custom_call.1} parent=51 // pred_check_branch
          %280 = sbr.rel (%p278) target = $region56
        $region55: #{tpu_custom_call.1} parent=51 // pred_region
          %s281 = sand.u32 %s115, 1
          %s282 = scalar_lea.sflag [#allocation4], %s281
          %s283 = sand.u32 %s115, 1
          %s284 = smul.addr %s283, 4
          %s285 = scalar_lea.vmem [#allocation9], %s284
          %286 = dma.done %s282, 64
        $region56: #{tpu_custom_call.1} parent=51 // pred_fallthru
          _
      $region52: #{tpu_custom_call.1} parent=5 // pred_fallthru
        _
    $region6: #{tpu_custom_call.1} parent=1 // loop_footer
      %s21 = sadd.s32 1, %s17
    $region7: #{tpu_custom_call.1} parent=1 // loop_footer_branch
      %16 = sbr.rel target = $region3
    $region8: #{tpu_custom_call.1} parent=1 // loop_exit
      _
    %287 = vsyncpa [#allocation3], 1
    %s288 = scalar_lea.sflag [#allocation3], 1
    %289 = vsyncpa %s288, 1
    %290 = vsyncpa [#allocation4], 1
    %s291 = scalar_lea.sflag [#allocation4], 1
    %292 = vsyncpa %s291, 1
    %293 = vsyncpa [#allocation5], 1
    %s294 = scalar_lea.sflag [#allocation5], 1
    %295 = vsyncpa %s294, 1
    %296 = vsyncpa [#allocation6], 1
    %s297 = scalar_lea.sflag [#allocation6], 1
    %298 = vsyncpa %s297, 1

</llo_original>
